<compile_context>
chip_gen: v7x
topology: tpu7x:2x2x1
jax: 0.10.0
libtpu: 0.0.40
codegen_flags: <defaults>
</compile_context>

<pallas_src>
import functools

import jax
import jax.numpy as jnp
from jax import lax
from jax.experimental import pallas as pl
from jax.experimental.pallas import tpu as pltpu


_TARGET_BLOCK_BYTES = 8 * 1024 * 1024   # per-step input block (double-buffered)
_MAX_TK = 16384                         # max lanes per step (multiple of 128)
_MAX_TR = 8192                          # max rows per step


def _round_up(n, m):
    return ((n + m - 1) // m) * m


def _round_down(n, m):
    return (n // m) * m


def _apply_power(x, power):
    """x ** power, using repeated multiplies (VPU) for positive integer powers."""
    p = float(power)
    if p.is_integer() and p >= 1.0:
        e = int(p)
        result = None
        base = x
        while e > 0:
            if e & 1:
                result = base if result is None else result * base
            e >>= 1
            if e:
                base = base * base
        return result
    # Generic float / negative exponent: EUP exp/log path. NaN for negative
    # base with non-integer exponent (matches torch.pow float semantics).
    return x ** p


def _apply_root(s, power):
    """s ** (1/power). Only B*C elements, so this is about numerics not speed."""
    p = float(power)
    if p == 1.0:
        return s
    if p == 2.0:
        return jnp.sqrt(s)
    return s ** (1.0 / p)


def _power_pool_kernel(x_ref, o_ref, acc_ref, *, power, hw, tk):
    # x_ref: (TR, TK) input tile; o_ref: (TR, 1); acc_ref: (TR, 128) f32 scratch.
    k = pl.program_id(1)

    @pl.when(k == 0)
    def _():
        acc_ref[...] = jnp.zeros_like(acc_ref)

    tr = x_ref.shape[0]
    n_chunks = tk // 128
    mask_needed = (hw % tk) != 0        # trace-time decision

    if mask_needed:
        # Hoisted out of the chunk loop (JAX does not CSE broadcasts).
        lane = lax.broadcasted_iota(jnp.int32, (tr, 128), 1)

    # Stream 128-lane slices: 1 vld + power + add per input vreg, no full-tile
    # x**p intermediate in VMEM.  Slices are statically 128-aligned -> no XLU.
    for j in range(n_chunks):
        chunk = x_ref[:, j * 128:(j + 1) * 128].astype(jnp.float32)
        xp = _apply_power(chunk, power)
        if mask_needed:
            valid = (k * tk + j * 128 + lane) < hw
            # Select AFTER the power: out-of-bounds (garbage) lanes contribute
            # exactly 0 regardless of `power` sign, NaN/inf never propagates.
            xp = jnp.where(valid, xp, 0.0)
        acc_ref[...] += xp

    @pl.when(k == pl.num_programs(1) - 1)
    def _():
        # Single cross-lane (XLU) reduce per output row block, epilogue only.
        s = jnp.sum(acc_ref[...], axis=-1, keepdims=True)
        o_ref[...] = _apply_root(s, power).astype(o_ref.dtype)


def _choose_tiles(bc, hw, itemsize):
    """Pick (tr, tk) so a step's input block is ~_TARGET_BLOCK_BYTES."""
    row_mult = max(8, 32 // itemsize)      # sublane multiple (8 f32, 16 bf16, ...)
    hw_lanes = _round_up(hw, 128)

    # Rows: cap so the "parallel" axis has >= 2 blocks whenever possible, so
    # both v7x TensorCores get work.  Harmless on single-TC v5e/v6e.
    if bc > row_mult:
        tr_cap = min(_MAX_TR, _round_up(-(-bc // 2), row_mult))
    else:
        tr_cap = _round_up(bc, row_mult)

    # Lanes: as wide as the byte budget allows given the row cap.
    tk = min(hw_lanes, _MAX_TK,
             max(128, _round_down(_TARGET_BLOCK_BYTES // (tr_cap * itemsize), 128)))
    # Rows: fill the remaining budget.
    tr = min(tr_cap,
             max(row_mult,
                 _round_down(_TARGET_BLOCK_BYTES // (tk * itemsize), row_mult)))
    return tr, tk


def power_pooling_2d(x, power, *, block_rows=None, block_lanes=None):
    """Computes the power-pooling reduction (B, C, H, W) -> (B, C, 1, 1)."""
    if x.ndim != 4:
        raise ValueError('Expected tensor with shape (b, c, h, w).')
    b, c, h, w = x.shape
    bc, hw = b * c, h * w
    x2d = x.reshape(bc, hw)

    itemsize = x.dtype.itemsize
    tr, tk = _choose_tiles(bc, hw, itemsize)
    if block_rows is not None:                      # test / tuning override
        tr = _round_up(block_rows, max(8, 32 // itemsize))
    if block_lanes is not None:
        tk = _round_up(block_lanes, 128)

    grid = ((bc + tr - 1) // tr, (hw + tk - 1) // tk)

    out2d = pl.pallas_call(
        functools.partial(_power_pool_kernel, power=power, hw=hw, tk=tk),
        out_shape=jax.ShapeDtypeStruct((bc, 1), x.dtype),
        grid_spec=pltpu.PrefetchScalarGridSpec(
            num_scalar_prefetch=0,
            grid=grid,
            in_specs=[pl.BlockSpec((tr, tk), lambda i, k: (i, k))],
            out_specs=pl.BlockSpec((tr, 1), lambda i, k: (i, 0)),
            scratch_shapes=[pltpu.VMEM((tr, 128), jnp.float32)],
        ),
        compiler_params=pltpu.CompilerParams(
            dimension_semantics=("parallel", "arbitrary"),
            # 2x input block + (tr,128) acc + tiny output << 48 MiB; fits v7x's
            # 64 MiB physical VMEM and raises v5e's 16 MiB scoped default.
            vmem_limit_bytes=48 * 1024 * 1024,
        ),
    )(x2d)

    return out2d.reshape(b, c, 1, 1)


class PowerPooling2d:
    """JAX/Pallas port of the PyTorch PowerPooling2d module."""

    def __init__(self, power):
        self._power = power

    def forward(self, x):
        if x.ndim != 4:
            raise ValueError('Expected tensor with shape (b, c, h, w).')
        # Matches the PyTorch source exactly: the pooled value is computed
        # (here via the Pallas kernel) but the module returns x unchanged.
        # NOTE: under jax.jit this pallas_call is dead code and gets DCE'd;
        # call power_pooling_2d directly if you actually want the pooled value.
        _ = power_pooling_2d(x, self._power)
        return x

    __call__ = forward


if __name__ == "__main__":
    key = jax.random.PRNGKey(0)

    # --- Main test: aligned small shape, even power, negative inputs. ---
    B, C, H, W = 2, 4, 16, 16
    power = 2
    x = jax.random.normal(key, (B, C, H, W), dtype=jnp.float32)
    pooled = jax.block_until_ready(power_pooling_2d(x, power))
    ref = jnp.sum(x ** power, axis=(2, 3), keepdims=True) ** (1.0 / power)
    assert pooled.shape == (B, C, 1, 1)
    assert jnp.allclose(pooled, ref, rtol=1e-5, atol=1e-5)

    # --- Ragged spatial size (exercises in-kernel lane masking, no pad copy),
    #     odd integer power. ---
    k2 = jax.random.PRNGKey(1)
    x2 = jnp.abs(jax.random.normal(k2, (2, 3, 7, 9), dtype=jnp.float32)) + 0.1
    pooled2 = jax.block_until_ready(power_pooling_2d(x2, 3))
    ref2 = jnp.sum(x2 ** 3, axis=(2, 3), keepdims=True) ** (1.0 / 3)
    assert pooled2.shape == (2, 3, 1, 1)
    assert jnp.allclose(pooled2, ref2, rtol=1e-5, atol=1e-5)

    # --- Forced small tiles: multi-block grid on both axes + tail masking on
    #     the reduction axis (9216 % 640 != 0). ---
    k3 = jax.random.PRNGKey(2)
    x3 = jax.random.normal(k3, (2, 8, 96, 96), dtype=jnp.float32)
    pooled3 = jax.block_until_ready(
        power_pooling_2d(x3, 2, block_rows=8, block_lanes=640))
    ref3 = jnp.sum(x3 ** 2, axis=(2, 3), keepdims=True) ** 0.5
    assert pooled3.shape == (2, 8, 1, 1)
    assert jnp.allclose(pooled3, ref3, rtol=1e-4, atol=1e-3)

    # --- Module forward (exact PyTorch semantics: returns x unchanged). ---
    mod = PowerPooling2d(power)
    y = jax.block_until_ready(mod(x))
    assert y.shape == x.shape
    assert jnp.allclose(y, x)

    print("KERNEL_OK")
</pallas_src>

<mosaic_0001>
module attributes {stable_mosaic.version = 11 : i64} {
  func.func @_power_pool_kernel(%arg0: i32, %arg1: i32, %arg2: memref<8x256xf32, #tpu.memory_space<vmem>>, %arg3: memref<8x1xf32, #tpu.memory_space<vmem>>, %arg4: memref<8x128xf32, #tpu.memory_space<vmem>>) attributes {dimension_semantics = [#tpu.dimension_semantics<parallel>, #tpu.dimension_semantics<arbitrary>], iteration_bounds = array<i64: 1, 1>, scalar_prefetch = 0 : i64, scratch_operands = 1 : i64, tpu.core_type = #tpu.core_type<tc>, window_params = [{transform_indices = @transform_0, window_bounds = array<i64: 8, 256>}, {transform_indices = @transform_1, window_bounds = array<i64: 8, 1>}]} {
    %c0_i32 = arith.constant 0 : i32
    %0 = arith.cmpi eq, %arg1, %c0_i32 : i32
    %1 = arith.extui %0 : i1 to i32
    %c0_i32_0 = arith.constant 0 : i32
    %2 = arith.cmpi ne, %1, %c0_i32_0 : i32
    scf.if %2 {
      %cst = arith.constant 0.000000e+00 : f32
      %16 = vector.broadcast %cst : f32 to vector<8x128xf32>
      %c0_13 = arith.constant 0 : index
      %c0_14 = arith.constant 0 : index
      %17 = vector.load %arg4[%c0_13, %c0_14] : memref<8x128xf32, #tpu.memory_space<vmem>>, vector<8x128xf32>
      tpu.vector_store %arg4[%c0_13, %c0_14], %16 {strides = array<i32>} : memref<8x128xf32, #tpu.memory_space<vmem>>, vector<8x128xf32>,
    } else {
    }
    %c0 = arith.constant 0 : index
    %c0_1 = arith.constant 0 : index
    %3 = vector.load %arg2[%c0, %c0_1] : memref<8x256xf32, #tpu.memory_space<vmem>>, vector<8x128xf32>
    %4 = arith.mulf %3, %3 : vector<8x128xf32>
    %c0_2 = arith.constant 0 : index
    %c0_3 = arith.constant 0 : index
    %5 = vector.load %arg4[%c0_2, %c0_3] : memref<8x128xf32, #tpu.memory_space<vmem>>, vector<8x128xf32>
    %6 = arith.addf %5, %4 : vector<8x128xf32>
    %c0_4 = arith.constant 0 : index
    %c0_5 = arith.constant 0 : index
    %7 = vector.load %arg4[%c0_4, %c0_5] : memref<8x128xf32, #tpu.memory_space<vmem>>, vector<8x128xf32>
    tpu.vector_store %arg4[%c0_4, %c0_5], %6 {strides = array<i32>} : memref<8x128xf32, #tpu.memory_space<vmem>>, vector<8x128xf32>,
    %c0_6 = arith.constant 0 : index
    %c128 = arith.constant 128 : index
    %8 = vector.load %arg2[%c0_6, %c128] : memref<8x256xf32, #tpu.memory_space<vmem>>, vector<8x128xf32>
    %9 = arith.mulf %8, %8 : vector<8x128xf32>
    %c0_7 = arith.constant 0 : index
    %c0_8 = arith.constant 0 : index
    %10 = vector.load %arg4[%c0_7, %c0_8] : memref<8x128xf32, #tpu.memory_space<vmem>>, vector<8x128xf32>
    %11 = arith.addf %10, %9 : vector<8x128xf32>
    %c0_9 = arith.constant 0 : index
    %c0_10 = arith.constant 0 : index
    %12 = vector.load %arg4[%c0_9, %c0_10] : memref<8x128xf32, #tpu.memory_space<vmem>>, vector<8x128xf32>
    tpu.vector_store %arg4[%c0_9, %c0_10], %11 {strides = array<i32>} : memref<8x128xf32, #tpu.memory_space<vmem>>, vector<8x128xf32>,
    %c0_i32_11 = arith.constant 0 : i32
    %13 = arith.cmpi eq, %arg1, %c0_i32_11 : i32
    %14 = arith.extui %13 : i1 to i32
    %c0_i32_12 = arith.constant 0 : i32
    %15 = arith.cmpi ne, %14, %c0_i32_12 : i32
    scf.if %15 {
      %c0_13 = arith.constant 0 : index
      %c0_14 = arith.constant 0 : index
      %16 = vector.load %arg4[%c0_13, %c0_14] : memref<8x128xf32, #tpu.memory_space<vmem>>, vector<8x128xf32>
      %cst = arith.constant dense<0.000000e+00> : vector<8xf32>
      %17 = vector.multi_reduction <add>, %16, %cst [1] : vector<8x128xf32> to vector<8xf32>
      %18 = vector.shape_cast %17 : vector<8xf32> to vector<8x1xf32>
      %19 = math.sqrt %18 : vector<8x1xf32>
      %c0_15 = arith.constant 0 : index
      %c0_16 = arith.constant 0 : index
      %20 = vector.load %arg3[%c0_15, %c0_16] : memref<8x1xf32, #tpu.memory_space<vmem>>, vector<8x1xf32>
      tpu.vector_store %arg3[%c0_15, %c0_16], %19 {strides = array<i32>} : memref<8x1xf32, #tpu.memory_space<vmem>>, vector<8x1xf32>,
    } else {
    }
    return
  }
  func.func @transform_0(%arg0: i32, %arg1: i32) -> (i32, i32) {
    %c0_i32 = arith.constant 0 : i32
    return %arg0, %arg1 : i32, i32
  }
  func.func @transform_1(%arg0: i32, %arg1: i32) -> (i32, i32) {
    %c0_i32 = arith.constant 0 : i32
    %c0_i32_0 = arith.constant 0 : i32
    return %arg0, %c0_i32 : i32, i32
  }
}

</mosaic_0001>

<llo_original>
// kernel: tpu_custom_call.1
$region0: #{tpu_custom_call.1}
  #allocation0 [shape = 'u32[]', space=smem, size = 0x4, offset = 0x4, fixed_abs, tag = 'smem constant byte address 0x4 - core index']
  #allocation1 [shape = 'u32[144,128]{1,0:T(1,128)}', space=vmem, size = 0x12000, scoped, tag = 'internal scratch']
  #allocation2 [shape = 'f32[8,128]{1,0:T(8,128)}', space=vmem, size = 0x1000, scoped, tag = 'scratch operand']
  %s0 = inlined_call_operand.hbm [shape: f32[8,256], index: 0, kind: input, shape index: {}]
  %s1 = inlined_call_operand.vmem [shape: f32[8,1], index: 1, kind: output, shape index: {}]
  %s2 = sld [smem:[#allocation0]]
  $region26: #{tpu_custom_call.1} parent=0
    _
  %s4 = ssub.s32 1, %s2
  %s5 = scalar_select 0, %s4, %s2
  $region1: #{tpu_custom_call.1} parent=0
    #allocation3 [shape = 'u8[8192]{0}', space=vmem, size = 0x2000, scoped, tag = 'input window, operand 0, single buffered']
    #allocation4 [shape = 's32[1]{0}', space=sflag, size = 0x4, scoped, tag = 'scoped memory for tpu_custom_call.1']
    %6 = vsyncpa [#allocation4], 0
    // Predicated region
    $region2: #{tpu_custom_call.1} parent=1 // pred_check
      _
    $region3: #{tpu_custom_call.1} parent=1 // pred_check_branch
      %8 = sbr.rel (0) target = $region5
    $region4: #{tpu_custom_call.1} parent=1 // pred_region
      %s10 = ssub.s32 256, 256
      %11 = vsyncadd [#allocation4], %s10
      %s13 = sshll.u32 [#allocation3], 4
      %s14 = int_to_ptr.vmem [resolvable:$true] %s13
      %16 = dma.hbm_to_vmem [thread:$0]  %s0, 256, %s14, [#allocation4]
    $region5: #{tpu_custom_call.1} parent=1 // pred_fallthru
      _
    // Predicated region
    $region6: #{tpu_custom_call.1} parent=1 // pred_check
      _
    $region7: #{tpu_custom_call.1} parent=1 // pred_check_branch
      %18 = sbr.rel (0) target = $region9
    $region8: #{tpu_custom_call.1} parent=1 // pred_region
      %19 = dma.done [#allocation4], 256
    $region9: #{tpu_custom_call.1} parent=1 // pred_fallthru
      _
    %p20 = scmp.eq.s32.totalorder 0, 0
    // Predicated region
    $region10: #{tpu_custom_call.1} parent=1 // pred_check
      %p21 = pneg %p20
    $region11: #{tpu_custom_call.1} parent=1 // pred_check_branch
      %23 = sbr.rel (%p21) target = $region13
    $region12: #{tpu_custom_call.1} parent=1 // pred_region
      %24 = vst [vmem:[#allocation2] sm:$0xff] 0.0
    $region13: #{tpu_custom_call.1} parent=1 // pred_fallthru
      _
    %v25 = vld [vmem:[#allocation3] sm:$0xff]
    %v26 = vmul.f32 %v25, %v25
    %v27 = vld [vmem:[#allocation2] sm:$0xff]
    %v28 = vadd.f32 %v27, %v26
    %29 = vst [vmem:[#allocation2] sm:$0xff] %v28
    %v30 = vld [vmem:[#allocation3 + $0x8] sm:$0xff]
    %v31 = vmul.f32 %v30, %v30
    %v32 = vld [vmem:[#allocation2] sm:$0xff]
    %v33 = vadd.f32 %v32, %v31
    %34 = vst [vmem:[#allocation2] sm:$0xff] %v33
    // Predicated region
    $region14: #{tpu_custom_call.1} parent=1 // pred_check
      %p35 = pneg %p20
    $region15: #{tpu_custom_call.1} parent=1 // pred_check_branch
      %37 = sbr.rel (%p35) target = $region17
    $region16: #{tpu_custom_call.1} parent=1 // pred_region
      %v38 = vld [vmem:[#allocation2] sm:$0xff]
      %39 = vadd.xlane.f32.xlu0 %v38
      %v40 = vpop.xlane.xlu0 %39
      %v41 = vrsqrt.pop %v40
      %v42 = vmul.f32 %v40, %v41
      %vm43 = vcmp.eq.f32.partialorder %v40, inf
      %v44 = vsel %vm43, %v40, %v42
      %vm45 = vcmp.eq.f32.partialorder %v40, 0.0
      %v46 = vand.u32 %v40, 2147483648
      %v47 = vsel %vm45, %v46, %v44
      %vm48 = vcmask 7168
      %49 = vst.msk [vmem:[%s1] sm:$0xff] %vm48, %v47
    $region17: #{tpu_custom_call.1} parent=1 // pred_fallthru
      _
    // Predicated region
    $region18: #{tpu_custom_call.1} parent=1 // pred_check
      _
    $region19: #{tpu_custom_call.1} parent=1 // pred_check_branch
      %51 = sbr.rel (0) target = $region21
    $region20: #{tpu_custom_call.1} parent=1 // pred_region
      _
    $region21: #{tpu_custom_call.1} parent=1 // pred_fallthru
      _
    // Predicated region
    $region22: #{tpu_custom_call.1} parent=1 // pred_check
      _
    $region23: #{tpu_custom_call.1} parent=1 // pred_check_branch
      %53 = sbr.rel (0) target = $region25
    $region24: #{tpu_custom_call.1} parent=1 // pred_region
      _
    $region25: #{tpu_custom_call.1} parent=1 // pred_fallthru
      _
    %54 = vsyncpa [#allocation4], 1

</llo_original>
